<compile_context>
chip_gen: v5e
topology: v5e:2x2
jax: 0.10.0
libtpu: 0.0.40
codegen_flags: <defaults>
</compile_context>

<pallas_src>
import math
from functools import partial

import numpy as np
import jax
import jax.numpy as jnp
from jax import lax
from jax.experimental import pallas as pl
from jax.experimental.pallas import tpu as pltpu


def gen_timing_signal(length, channels, min_timescale=1.0, max_timescale=1.0e4):
    """JAX port of _gen_timing_signal (sinusoidal [1, length, channels])."""
    position = np.arange(length)
    num_timescales = channels // 2
    log_timescale_increment = (
        math.log(float(max_timescale) / float(min_timescale))
        / (float(num_timescales) - 1)
    )
    inv_timescales = min_timescale * np.exp(
        np.arange(num_timescales).astype(np.float64) * -log_timescale_increment
    )
    scaled_time = np.expand_dims(position, 1) * np.expand_dims(inv_timescales, 0)
    signal = np.concatenate([np.sin(scaled_time), np.cos(scaled_time)], axis=1)
    signal = np.pad(
        signal, [[0, 0], [0, channels % 2]], "constant", constant_values=0.0
    )
    signal = signal.reshape([1, length, channels])
    return jnp.asarray(signal, dtype=jnp.float32)


def _round_up(x, m):
    return (x + m - 1) // m * m


def _vmem_capacity_bytes():
    """Best-effort VMEM capacity query (64 MiB/TC on v7x, 128 MiB on v5e/v6e)."""
    try:
        return int(pltpu.get_tpu_info().vmem_capacity_bytes)
    except Exception:
        return 128 * 1024 * 1024  # conservative fallback


def act_kernel(state_ref, time_ref, pos_ref, wp_ref, bp_ref, w1_ref, b1_ref,
               prev_ref, rem_ref, nup_ref, *, max_hop, threshold):
    """Processes one (TILE_M, D) token tile; whole ponder loop runs in VMEM."""
    state = state_ref[...]            # (T, D) f32
    time_enc = time_ref[...]          # (T, D) f32
    wp = wp_ref[...]                  # (D, 128) f32 halting weight (col 0 live)
    bp = bp_ref[...]                  # (1, 1)  f32 halting bias
    w1 = w1_ref[...]                  # (D, D)  bf16 transition-fn weight
    b1 = b1_ref[...]                  # (1, D)  f32 transition-fn bias

    t = state.shape[0]
    hp = jnp.zeros((t, 1), jnp.float32)        # halting_probability

    # Accumulate results through the VMEM-resident output refs so the ponder
    # loop carries only (state, hp).
    prev_ref[...] = jnp.zeros_like(prev_ref)
    rem_ref[...] = jnp.zeros_like(rem_ref)
    nup_ref[...] = jnp.zeros_like(nup_ref)

    # max_hop is a small static Python int -> fully unrolled ponder loop so the
    # scheduler can overlap the MXU matmul of step k with bookkeeping of k±1.
    # TODO(synk): switch to lax.fori_loop for very large max_hop.
    for step in range(max_hop):
        pe = pos_ref[pl.ds(step, 1), :]        # (1, D) static slice
        state = state + time_enc + pe

        # p = sigmoid(Linear(D, 1)(state)) on the MXU; kept in f32 so the
        # threshold comparison is not perturbed by bf16 rounding.
        logits = jnp.dot(state, wp, preferred_element_type=jnp.float32)[:, 0:1]
        p = jax.nn.sigmoid(logits + bp)        # (T, 1)

        rem = rem_ref[...]
        still = (hp < 1.0).astype(jnp.float32)
        hp_cand = hp + p * still
        new_halted = (hp_cand > threshold).astype(jnp.float32) * still
        still = (hp_cand <= threshold).astype(jnp.float32) * still
        hp = hp + p * still
        rem = rem + new_halted * (1.0 - hp)
        hp = hp + new_halted * rem
        # Clamp freshly-halted tokens to exactly 1.0 so the remaining fixed-trip
        # iterations are exact no-ops (fp32 hp + (1-hp) can miss 1.0 by an ulp
        # and would otherwise double-count updates/remainders).
        hp = jnp.where(new_halted > 0.0, 1.0, hp)
        rem_ref[...] = rem
        nup_ref[...] = nup_ref[...] + still + new_halted
        uw = p * still + new_halted * rem      # update_weights, (T, 1)

        # Transition fn: position-wise Linear(D, D) + GELU. bf16 MXU operands,
        # f32 accumulate; ACT bookkeeping and the blend stay in f32.
        ys = jnp.dot(state.astype(jnp.bfloat16), w1,
                     preferred_element_type=jnp.float32)
        state = jax.nn.gelu(ys + b1, approximate=True)

        prev = prev_ref[...]
        prev_ref[...] = prev + uw * (state - prev)


def act_forward(state, time_enc, pos_enc, wp, bp, w1, b1, *,
                max_hop, threshold, tile_tokens=None):
    b, l, d = state.shape
    n = b * l

    # Flatten to 2D (tokens, D): the ponder recurrence is per-token, so the
    # token axis is an embarrassingly parallel grid axis.
    state2d = state.reshape(n, d).astype(jnp.float32)
    time2d = jnp.broadcast_to(time_enc.reshape(1, l, d), (b, l, d))
    time2d = time2d.reshape(n, d).astype(jnp.float32)
    pos2d = pos_enc.reshape(max_hop, d).astype(jnp.float32)
    # Halting weight padded to 128 output lanes (MXU pads internally anyway).
    wp_mat = jnp.pad(wp.reshape(d, 1).astype(jnp.float32), ((0, 0), (0, 127)))
    bp2 = bp.reshape(1, 1).astype(jnp.float32)
    w1_bf16 = w1.astype(jnp.bfloat16)          # bf16 MXU operand, VMEM-resident
    b1r = b1.reshape(1, d).astype(jnp.float32)

    vmem_cap = _vmem_capacity_bytes()
    if tile_tokens is None:
        # ~12 live f32 (tile, D) slabs (double-buffered state/time/prev + loop
        # temps); budget at most half of this generation's VMEM.
        budget = min(vmem_cap // 2, 64 * 1024 * 1024)
        tile_tokens = int(max(8, min(512, budget // (12 * d * 4))))
    tile_tokens = max(8, _round_up(int(tile_tokens), 8))

    tile_m = min(tile_tokens, _round_up(n, 8))
    n_pad = _round_up(n, tile_m)
    if n_pad != n:
        state2d = jnp.pad(state2d, ((0, n_pad - n), (0, 0)))
        time2d = jnp.pad(time2d, ((0, n_pad - n), (0, 0)))

    kernel = partial(act_kernel, max_hop=int(max_hop), threshold=float(threshold))
    tiled = lambda i: (i, 0)
    resident = lambda i: (0, 0)

    grid_spec = pltpu.PrefetchScalarGridSpec(
        num_scalar_prefetch=0,
        grid=(n_pad // tile_m,),
        in_specs=[
            pl.BlockSpec((tile_m, d), tiled),       # state tile
            pl.BlockSpec((tile_m, d), tiled),       # time_enc tile
            pl.BlockSpec((max_hop, d), resident),   # pos_enc (resident)
            pl.BlockSpec((d, 128), resident),       # halting weight (resident)
            pl.BlockSpec((1, 1), resident),         # halting bias (resident)
            pl.BlockSpec((d, d), resident),         # transition weight (resident)
            pl.BlockSpec((1, d), resident),         # transition bias (resident)
        ],
        out_specs=[
            pl.BlockSpec((tile_m, d), tiled),       # previous_state
            pl.BlockSpec((tile_m, 1), tiled),       # remainders
            pl.BlockSpec((tile_m, 1), tiled),       # n_updates
        ],
    )
    out_shape = (
        jax.ShapeDtypeStruct((n_pad, d), jnp.float32),
        jax.ShapeDtypeStruct((n_pad, 1), jnp.float32),
        jax.ShapeDtypeStruct((n_pad, 1), jnp.float32),
    )
    fn = pl.pallas_call(
        kernel,
        out_shape=out_shape,
        grid_spec=grid_spec,
        compiler_params=pltpu.CompilerParams(
            dimension_semantics=("parallel",),
            vmem_limit_bytes=min(3 * vmem_cap // 4, 64 * 1024 * 1024),
        ),
    )
    prev, rem, nup = fn(state2d, time2d, pos2d, wp_mat, bp2, w1_bf16, b1r)
    prev = prev[:n].reshape(b, l, d)
    rem = rem[:n, 0].reshape(b, l)
    nup = nup[:n, 0].reshape(b, l)
    return prev, rem, nup


def act_reference(state, time_enc, pos_enc, wp, bp, w1, b1, *, max_hop, threshold):
    """Pure-JAX reference mirroring the kernel math (fixed max_hop loop)."""
    b, l, d = state.shape
    n = b * l
    st = state.reshape(n, d).astype(jnp.float32)
    time2d = jnp.broadcast_to(time_enc.reshape(1, l, d), (b, l, d)).reshape(n, d)
    wp_col = wp.reshape(d, 1).astype(jnp.float32)
    bp2 = bp.reshape(1, 1).astype(jnp.float32)
    b1r = b1.reshape(1, d).astype(jnp.float32)
    w1b = w1.astype(jnp.bfloat16)
    hp = jnp.zeros((n, 1), jnp.float32)
    rem = jnp.zeros((n, 1), jnp.float32)
    nup = jnp.zeros((n, 1), jnp.float32)
    prev = jnp.zeros((n, d), jnp.float32)
    for step in range(max_hop):
        st = st + time2d + pos_enc[:, step, :].reshape(1, d)
        p = jax.nn.sigmoid(
            jnp.dot(st, wp_col, preferred_element_type=jnp.float32) + bp2)
        still = (hp < 1.0).astype(jnp.float32)
        hp_cand = hp + p * still
        new_halted = (hp_cand > threshold).astype(jnp.float32) * still
        still = (hp_cand <= threshold).astype(jnp.float32) * still
        hp = hp + p * still
        rem = rem + new_halted * (1.0 - hp)
        hp = hp + new_halted * rem
        hp = jnp.where(new_halted > 0.0, 1.0, hp)
        nup = nup + still + new_halted
        uw = p * still + new_halted * rem
        ys = jnp.dot(st.astype(jnp.bfloat16), w1b,
                     preferred_element_type=jnp.float32)
        st = jax.nn.gelu(ys + b1r, approximate=True)
        prev = prev + uw * (st - prev)
    return prev.reshape(b, l, d), rem.reshape(b, l), nup.reshape(b, l)


if __name__ == "__main__":
    key = jax.random.PRNGKey(0)
    b, l, d = 2, 8, 32
    factor = 3
    threshold = 1.0 - 0.1  # self.threshold = 1 - 0.1

    k1, k2, k3, k4, k5 = jax.random.split(key, 5)
    state = jax.random.normal(k1, (b, l, d), jnp.float32)

    # Deterministic parameter init (shapes from __init__ / chosen transition fn).
    bound = 1.0 / math.sqrt(d)
    wp = jax.random.uniform(k2, (1, 1, d), jnp.float32, -bound, bound)  # Linear(d,1) weight
    bp = jax.random.uniform(k3, (1, 1), jnp.float32, -bound, bound)     # Linear(d,1) bias
    w1 = jax.random.uniform(k4, (d, d), jnp.float32, -bound, bound)     # fn: Linear(d,d) weight
    b1 = jax.random.uniform(k5, (1, 1, d), jnp.float32, -bound, bound)  # fn: Linear(d,d) bias

    # max_hop default (encoder_output=None -> uses state.size(-2) == l)
    max_hop = max(2, int((l ** (1.0 / factor) + l ** (1.0 / factor)) / 2) + 1)

    time_enc = gen_timing_signal(l, d)
    pos_enc = gen_timing_signal(max_hop, d)

    prev, rem, nup = act_forward(
        state, time_enc, pos_enc, wp, bp, w1, b1,
        max_hop=max_hop, threshold=threshold,
    )
    jax.block_until_ready((prev, rem, nup))

    ref_prev, ref_rem, ref_nup = act_reference(
        state, time_enc, pos_enc, wp, bp, w1, b1,
        max_hop=max_hop, threshold=threshold,
    )
    np.testing.assert_allclose(np.asarray(prev), np.asarray(ref_prev),
                               rtol=2e-2, atol=2e-2)
    np.testing.assert_allclose(np.asarray(rem), np.asarray(ref_rem),
                               rtol=2e-2, atol=2e-2)
    np.testing.assert_allclose(np.asarray(nup), np.asarray(ref_nup),
                               rtol=0, atol=0)
    assert prev.shape == (b, l, d) and rem.shape == (b, l) and nup.shape == (b, l)
    print("KERNEL_OK")
</pallas_src>

<mosaic_0001>
module attributes {stable_mosaic.version = 11 : i64} {
  func.func @act_kernel(%arg0: i32, %arg1: memref<16x32xf32, #tpu.memory_space<vmem>>, %arg2: memref<16x32xf32, #tpu.memory_space<vmem>>, %arg3: memref<3x32xf32, #tpu.memory_space<vmem>>, %arg4: memref<32x128xf32, #tpu.memory_space<vmem>>, %arg5: memref<1x1xf32, #tpu.memory_space<vmem>>, %arg6: memref<32x32xbf16, #tpu.memory_space<vmem>>, %arg7: memref<1x32xf32, #tpu.memory_space<vmem>>, %arg8: memref<16x32xf32, #tpu.memory_space<vmem>>, %arg9: memref<16x1xf32, #tpu.memory_space<vmem>>, %arg10: memref<16x1xf32, #tpu.memory_space<vmem>>) attributes {dimension_semantics = [#tpu.dimension_semantics<parallel>], iteration_bounds = array<i64: 1>, scalar_prefetch = 0 : i64, scratch_operands = 0 : i64, tpu.core_type = #tpu.core_type<tc>, window_params = [{transform_indices = @transform_0, window_bounds = array<i64: 16, 32>}, {transform_indices = @transform_1, window_bounds = array<i64: 16, 32>}, {pipeline_mode = #tpu.pipeline_mode<synchronous>, transform_indices = @transform_2, window_bounds = array<i64: 3, 32>}, {pipeline_mode = #tpu.pipeline_mode<synchronous>, transform_indices = @transform_3, window_bounds = array<i64: 32, 128>}, {pipeline_mode = #tpu.pipeline_mode<synchronous>, transform_indices = @transform_4, window_bounds = array<i64: 1, 1>}, {pipeline_mode = #tpu.pipeline_mode<synchronous>, transform_indices = @transform_5, window_bounds = array<i64: 32, 32>}, {pipeline_mode = #tpu.pipeline_mode<synchronous>, transform_indices = @transform_6, window_bounds = array<i64: 1, 32>}, {transform_indices = @transform_7, window_bounds = array<i64: 16, 32>}, {transform_indices = @transform_8, window_bounds = array<i64: 16, 1>}, {transform_indices = @transform_9, window_bounds = array<i64: 16, 1>}]} {
    %c0 = arith.constant 0 : index
    %c0_0 = arith.constant 0 : index
    %0 = vector.load %arg1[%c0, %c0_0] : memref<16x32xf32, #tpu.memory_space<vmem>>, vector<16x32xf32>
    %c0_1 = arith.constant 0 : index
    %c0_2 = arith.constant 0 : index
    %1 = vector.load %arg2[%c0_1, %c0_2] : memref<16x32xf32, #tpu.memory_space<vmem>>, vector<16x32xf32>
    %c0_3 = arith.constant 0 : index
    %c0_4 = arith.constant 0 : index
    %2 = vector.load %arg4[%c0_3, %c0_4] : memref<32x128xf32, #tpu.memory_space<vmem>>, vector<32x128xf32>
    %c0_5 = arith.constant 0 : index
    %c0_6 = arith.constant 0 : index
    %3 = vector.load %arg5[%c0_5, %c0_6] : memref<1x1xf32, #tpu.memory_space<vmem>>, vector<1x1xf32>
    %c0_7 = arith.constant 0 : index
    %c0_8 = arith.constant 0 : index
    %4 = vector.load %arg6[%c0_7, %c0_8] : memref<32x32xbf16, #tpu.memory_space<vmem>>, vector<32x32xbf16>
    %c0_9 = arith.constant 0 : index
    %c0_10 = arith.constant 0 : index
    %5 = vector.load %arg7[%c0_9, %c0_10] : memref<1x32xf32, #tpu.memory_space<vmem>>, vector<1x32xf32>
    %cst = arith.constant 0.000000e+00 : f32
    %6 = vector.broadcast %cst : f32 to vector<16x1xf32>
    %cst_11 = arith.constant 0.000000e+00 : f32
    %7 = vector.broadcast %cst_11 : f32 to vector<16x32xf32>
    %c0_12 = arith.constant 0 : index
    %c0_13 = arith.constant 0 : index
    %8 = vector.load %arg8[%c0_12, %c0_13] : memref<16x32xf32, #tpu.memory_space<vmem>>, vector<16x32xf32>
    tpu.vector_store %arg8[%c0_12, %c0_13], %7 {strides = array<i32>} : memref<16x32xf32, #tpu.memory_space<vmem>>, vector<16x32xf32>,
    %cst_14 = arith.constant 0.000000e+00 : f32
    %9 = vector.broadcast %cst_14 : f32 to vector<16x1xf32>
    %c0_15 = arith.constant 0 : index
    %c0_16 = arith.constant 0 : index
    %10 = vector.load %arg9[%c0_15, %c0_16] : memref<16x1xf32, #tpu.memory_space<vmem>>, vector<16x1xf32>
    tpu.vector_store %arg9[%c0_15, %c0_16], %9 {strides = array<i32>} : memref<16x1xf32, #tpu.memory_space<vmem>>, vector<16x1xf32>,
    %cst_17 = arith.constant 0.000000e+00 : f32
    %11 = vector.broadcast %cst_17 : f32 to vector<16x1xf32>
    %c0_18 = arith.constant 0 : index
    %c0_19 = arith.constant 0 : index
    %12 = vector.load %arg10[%c0_18, %c0_19] : memref<16x1xf32, #tpu.memory_space<vmem>>, vector<16x1xf32>
    tpu.vector_store %arg10[%c0_18, %c0_19], %11 {strides = array<i32>} : memref<16x1xf32, #tpu.memory_space<vmem>>, vector<16x1xf32>,
    %c0_20 = arith.constant 0 : index
    %c0_21 = arith.constant 0 : index
    %13 = vector.load %arg3[%c0_20, %c0_21] : memref<3x32xf32, #tpu.memory_space<vmem>>, vector<1x32xf32>
    %14 = arith.addf %0, %1 : vector<16x32xf32>
    %15 = vector.broadcast %13 : vector<1x32xf32> to vector<16x32xf32>
    %16 = arith.addf %14, %15 : vector<16x32xf32>
    %cst_22 = arith.constant dense<0.000000e+00> : vector<16x128xf32>
    %17 = tpu.matmul %16, %2, %cst_22 {dimension_numbers = #tpu.dot_dimension_numbers<[1], [0], [0], [1], [0, 0, 1, 1], [], []>} : vector<16x32xf32>, vector<32x128xf32>, vector<16x128xf32> -> vector<16x128xf32>
    %18 = vector.extract_strided_slice %17 {offsets = [0, 0], sizes = [16, 1], strides = [1, 1]} : vector<16x128xf32> to vector<16x1xf32>
    %19 = vector.broadcast %3 : vector<1x1xf32> to vector<16x1xf32>
    %20 = arith.addf %18, %19 : vector<16x1xf32>
    %21 = arith.negf %20 : vector<16x1xf32>
    %22 = math.exp %21 : vector<16x1xf32>
    %cst_23 = arith.constant 1.000000e+00 : f32
    %23 = vector.broadcast %cst_23 : f32 to vector<16x1xf32>
    %24 = arith.addf %23, %22 : vector<16x1xf32>
    %25 = arith.divf %23, %24 : vector<16x1xf32>
    %c0_24 = arith.constant 0 : index
    %c0_25 = arith.constant 0 : index
    %26 = vector.load %arg9[%c0_24, %c0_25] : memref<16x1xf32, #tpu.memory_space<vmem>>, vector<16x1xf32>
    %cst_26 = arith.constant 1.000000e+00 : f32
    %27 = vector.broadcast %cst_26 : f32 to vector<16x1xf32>
    %28 = arith.cmpf olt, %6, %27 : vector<16x1xf32>
    %29 = arith.extui %28 : vector<16x1xi1> to vector<16x1xi32>
    %30 = arith.sitofp %29 : vector<16x1xi32> to vector<16x1xf32>
    %31 = arith.mulf %25, %30 : vector<16x1xf32>
    %32 = arith.addf %6, %31 : vector<16x1xf32>
    %cst_27 = arith.constant 0.899999976 : f32
    %33 = vector.broadcast %cst_27 : f32 to vector<16x1xf32>
    %34 = arith.cmpf ogt, %32, %33 : vector<16x1xf32>
    %35 = arith.extui %34 : vector<16x1xi1> to vector<16x1xi32>
    %36 = arith.sitofp %35 : vector<16x1xi32> to vector<16x1xf32>
    %37 = arith.mulf %36, %30 : vector<16x1xf32>
    %cst_28 = arith.constant 0.899999976 : f32
    %38 = vector.broadcast %cst_28 : f32 to vector<16x1xf32>
    %39 = arith.cmpf ole, %32, %38 : vector<16x1xf32>
    %40 = arith.extui %39 : vector<16x1xi1> to vector<16x1xi32>
    %41 = arith.sitofp %40 : vector<16x1xi32> to vector<16x1xf32>
    %42 = arith.mulf %41, %30 : vector<16x1xf32>
    %43 = arith.mulf %25, %42 : vector<16x1xf32>
    %44 = arith.addf %6, %43 : vector<16x1xf32>
    %cst_29 = arith.constant 1.000000e+00 : f32
    %45 = vector.broadcast %cst_29 : f32 to vector<16x1xf32>
    %46 = arith.subf %45, %44 : vector<16x1xf32>
    %47 = arith.mulf %37, %46 : vector<16x1xf32>
    %48 = arith.addf %26, %47 : vector<16x1xf32>
    %49 = arith.mulf %37, %48 : vector<16x1xf32>
    %50 = arith.addf %44, %49 : vector<16x1xf32>
    %cst_30 = arith.constant 0.000000e+00 : f32
    %51 = vector.broadcast %cst_30 : f32 to vector<16x1xf32>
    %52 = arith.cmpf ogt, %37, %51 : vector<16x1xf32>
    %cst_31 = arith.constant 1.000000e+00 : f32
    %53 = vector.broadcast %cst_31 : f32 to vector<16x1xf32>
    %54 = arith.select %52, %53, %50 : vector<16x1xi1>, vector<16x1xf32>
    %c0_32 = arith.constant 0 : index
    %c0_33 = arith.constant 0 : index
    %55 = vector.load %arg9[%c0_32, %c0_33] : memref<16x1xf32, #tpu.memory_space<vmem>>, vector<16x1xf32>
    tpu.vector_store %arg9[%c0_32, %c0_33], %48 {strides = array<i32>} : memref<16x1xf32, #tpu.memory_space<vmem>>, vector<16x1xf32>,
    %c0_34 = arith.constant 0 : index
    %c0_35 = arith.constant 0 : index
    %56 = vector.load %arg10[%c0_34, %c0_35] : memref<16x1xf32, #tpu.memory_space<vmem>>, vector<16x1xf32>
    %57 = arith.addf %56, %42 : vector<16x1xf32>
    %58 = arith.addf %57, %37 : vector<16x1xf32>
    %c0_36 = arith.constant 0 : index
    %c0_37 = arith.constant 0 : index
    %59 = vector.load %arg10[%c0_36, %c0_37] : memref<16x1xf32, #tpu.memory_space<vmem>>, vector<16x1xf32>
    tpu.vector_store %arg10[%c0_36, %c0_37], %58 {strides = array<i32>} : memref<16x1xf32, #tpu.memory_space<vmem>>, vector<16x1xf32>,
    %60 = arith.mulf %25, %42 : vector<16x1xf32>
    %61 = arith.mulf %37, %48 : vector<16x1xf32>
    %62 = arith.addf %60, %61 : vector<16x1xf32>
    %63 = arith.truncf %16 : vector<16x32xf32> to vector<16x32xbf16>
    %cst_38 = arith.constant dense<0.000000e+00> : vector<16x32xf32>
    %64 = tpu.matmul %63, %4, %cst_38 {dimension_numbers = #tpu.dot_dimension_numbers<[1], [0], [0], [1], [0, 0, 1, 1], [], []>} : vector<16x32xbf16>, vector<32x32xbf16>, vector<16x32xf32> -> vector<16x32xf32>
    %65 = vector.broadcast %5 : vector<1x32xf32> to vector<16x32xf32>
    %66 = arith.addf %64, %65 : vector<16x32xf32>
    %67 = arith.mulf %66, %66 : vector<16x32xf32>
    %68 = arith.mulf %66, %67 : vector<16x32xf32>
    %cst_39 = arith.constant 4.471500e-02 : f32
    %69 = vector.broadcast %cst_39 : f32 to vector<16x32xf32>
    %70 = arith.mulf %69, %68 : vector<16x32xf32>
    %71 = arith.addf %66, %70 : vector<16x32xf32>
    %cst_40 = arith.constant 0.797884583 : f32
    %72 = vector.broadcast %cst_40 : f32 to vector<16x32xf32>
    %73 = arith.mulf %72, %71 : vector<16x32xf32>
    %74 = math.tanh %73 : vector<16x32xf32>
    %cst_41 = arith.constant 1.000000e+00 : f32
    %75 = vector.broadcast %cst_41 : f32 to vector<16x32xf32>
    %76 = arith.addf %75, %74 : vector<16x32xf32>
    %cst_42 = arith.constant 5.000000e-01 : f32
    %77 = vector.broadcast %cst_42 : f32 to vector<16x32xf32>
    %78 = arith.mulf %77, %76 : vector<16x32xf32>
    %79 = arith.mulf %66, %78 : vector<16x32xf32>
    %c0_43 = arith.constant 0 : index
    %c0_44 = arith.constant 0 : index
    %80 = vector.load %arg8[%c0_43, %c0_44] : memref<16x32xf32, #tpu.memory_space<vmem>>, vector<16x32xf32>
    %81 = arith.subf %79, %80 : vector<16x32xf32>
    %82 = vector.broadcast %62 : vector<16x1xf32> to vector<16x32xf32>
    %83 = arith.mulf %82, %81 : vector<16x32xf32>
    %84 = arith.addf %80, %83 : vector<16x32xf32>
    %c0_45 = arith.constant 0 : index
    %c0_46 = arith.constant 0 : index
    %85 = vector.load %arg8[%c0_45, %c0_46] : memref<16x32xf32, #tpu.memory_space<vmem>>, vector<16x32xf32>
    tpu.vector_store %arg8[%c0_45, %c0_46], %84 {strides = array<i32>} : memref<16x32xf32, #tpu.memory_space<vmem>>, vector<16x32xf32>,
    %c1 = arith.constant 1 : index
    %c0_47 = arith.constant 0 : index
    %86 = vector.load %arg3[%c1, %c0_47] : memref<3x32xf32, #tpu.memory_space<vmem>>, vector<1x32xf32>
    %87 = arith.addf %79, %1 : vector<16x32xf32>
    %88 = vector.broadcast %86 : vector<1x32xf32> to vector<16x32xf32>
    %89 = arith.addf %87, %88 : vector<16x32xf32>
    %cst_48 = arith.constant dense<0.000000e+00> : vector<16x128xf32>
    %90 = tpu.matmul %89, %2, %cst_48 {dimension_numbers = #tpu.dot_dimension_numbers<[1], [0], [0], [1], [0, 0, 1, 1], [], []>} : vector<16x32xf32>, vector<32x128xf32>, vector<16x128xf32> -> vector<16x128xf32>
    %91 = vector.extract_strided_slice %90 {offsets = [0, 0], sizes = [16, 1], strides = [1, 1]} : vector<16x128xf32> to vector<16x1xf32>
    %92 = vector.broadcast %3 : vector<1x1xf32> to vector<16x1xf32>
    %93 = arith.addf %91, %92 : vector<16x1xf32>
    %94 = arith.negf %93 : vector<16x1xf32>
    %95 = math.exp %94 : vector<16x1xf32>
    %cst_49 = arith.constant 1.000000e+00 : f32
    %96 = vector.broadcast %cst_49 : f32 to vector<16x1xf32>
    %97 = arith.addf %96, %95 : vector<16x1xf32>
    %98 = arith.divf %96, %97 : vector<16x1xf32>
    %c0_50 = arith.constant 0 : index
    %c0_51 = arith.constant 0 : index
    %99 = vector.load %arg9[%c0_50, %c0_51] : memref<16x1xf32, #tpu.memory_space<vmem>>, vector<16x1xf32>
    %cst_52 = arith.constant 1.000000e+00 : f32
    %100 = vector.broadcast %cst_52 : f32 to vector<16x1xf32>
    %101 = arith.cmpf olt, %54, %100 : vector<16x1xf32>
    %102 = arith.extui %101 : vector<16x1xi1> to vector<16x1xi32>
    %103 = arith.sitofp %102 : vector<16x1xi32> to vector<16x1xf32>
    %104 = arith.mulf %98, %103 : vector<16x1xf32>
    %105 = arith.addf %54, %104 : vector<16x1xf32>
    %cst_53 = arith.constant 0.899999976 : f32
    %106 = vector.broadcast %cst_53 : f32 to vector<16x1xf32>
    %107 = arith.cmpf ogt, %105, %106 : vector<16x1xf32>
    %108 = arith.extui %107 : vector<16x1xi1> to vector<16x1xi32>
    %109 = arith.sitofp %108 : vector<16x1xi32> to vector<16x1xf32>
    %110 = arith.mulf %109, %103 : vector<16x1xf32>
    %cst_54 = arith.constant 0.899999976 : f32
    %111 = vector.broadcast %cst_54 : f32 to vector<16x1xf32>
    %112 = arith.cmpf ole, %105, %111 : vector<16x1xf32>
    %113 = arith.extui %112 : vector<16x1xi1> to vector<16x1xi32>
    %114 = arith.sitofp %113 : vector<16x1xi32> to vector<16x1xf32>
    %115 = arith.mulf %114, %103 : vector<16x1xf32>
    %116 = arith.mulf %98, %115 : vector<16x1xf32>
    %117 = arith.addf %54, %116 : vector<16x1xf32>
    %cst_55 = arith.constant 1.000000e+00 : f32
    %118 = vector.broadcast %cst_55 : f32 to vector<16x1xf32>
    %119 = arith.subf %118, %117 : vector<16x1xf32>
    %120 = arith.mulf %110, %119 : vector<16x1xf32>
    %121 = arith.addf %99, %120 : vector<16x1xf32>
    %122 = arith.mulf %110, %121 : vector<16x1xf32>
    %123 = arith.addf %117, %122 : vector<16x1xf32>
    %cst_56 = arith.constant 0.000000e+00 : f32
    %124 = vector.broadcast %cst_56 : f32 to vector<16x1xf32>
    %125 = arith.cmpf ogt, %110, %124 : vector<16x1xf32>
    %cst_57 = arith.constant 1.000000e+00 : f32
    %126 = vector.broadcast %cst_57 : f32 to vector<16x1xf32>
    %127 = arith.select %125, %126, %123 : vector<16x1xi1>, vector<16x1xf32>
    %c0_58 = arith.constant 0 : index
    %c0_59 = arith.constant 0 : index
    %128 = vector.load %arg9[%c0_58, %c0_59] : memref<16x1xf32, #tpu.memory_space<vmem>>, vector<16x1xf32>
    tpu.vector_store %arg9[%c0_58, %c0_59], %121 {strides = array<i32>} : memref<16x1xf32, #tpu.memory_space<vmem>>, vector<16x1xf32>,
    %c0_60 = arith.constant 0 : index
    %c0_61 = arith.constant 0 : index
    %129 = vector.load %arg10[%c0_60, %c0_61] : memref<16x1xf32, #tpu.memory_space<vmem>>, vector<16x1xf32>
    %130 = arith.addf %129, %115 : vector<16x1xf32>
    %131 = arith.addf %130, %110 : vector<16x1xf32>
    %c0_62 = arith.constant 0 : index
    %c0_63 = arith.constant 0 : index
    %132 = vector.load %arg10[%c0_62, %c0_63] : memref<16x1xf32, #tpu.memory_space<vmem>>, vector<16x1xf32>
    tpu.vector_store %arg10[%c0_62, %c0_63], %131 {strides = array<i32>} : memref<16x1xf32, #tpu.memory_space<vmem>>, vector<16x1xf32>,
    %133 = arith.mulf %98, %115 : vector<16x1xf32>
    %134 = arith.mulf %110, %121 : vector<16x1xf32>
    %135 = arith.addf %133, %134 : vector<16x1xf32>
    %136 = arith.truncf %89 : vector<16x32xf32> to vector<16x32xbf16>
    %cst_64 = arith.constant dense<0.000000e+00> : vector<16x32xf32>
    %137 = tpu.matmul %136, %4, %cst_64 {dimension_numbers = #tpu.dot_dimension_numbers<[1], [0], [0], [1], [0, 0, 1, 1], [], []>} : vector<16x32xbf16>, vector<32x32xbf16>, vector<16x32xf32> -> vector<16x32xf32>
    %138 = vector.broadcast %5 : vector<1x32xf32> to vector<16x32xf32>
    %139 = arith.addf %137, %138 : vector<16x32xf32>
    %140 = arith.mulf %139, %139 : vector<16x32xf32>
    %141 = arith.mulf %139, %140 : vector<16x32xf32>
    %cst_65 = arith.constant 4.471500e-02 : f32
    %142 = vector.broadcast %cst_65 : f32 to vector<16x32xf32>
    %143 = arith.mulf %142, %141 : vector<16x32xf32>
    %144 = arith.addf %139, %143 : vector<16x32xf32>
    %cst_66 = arith.constant 0.797884583 : f32
    %145 = vector.broadcast %cst_66 : f32 to vector<16x32xf32>
    %146 = arith.mulf %145, %144 : vector<16x32xf32>
    %147 = math.tanh %146 : vector<16x32xf32>
    %cst_67 = arith.constant 1.000000e+00 : f32
    %148 = vector.broadcast %cst_67 : f32 to vector<16x32xf32>
    %149 = arith.addf %148, %147 : vector<16x32xf32>
    %cst_68 = arith.constant 5.000000e-01 : f32
    %150 = vector.broadcast %cst_68 : f32 to vector<16x32xf32>
    %151 = arith.mulf %150, %149 : vector<16x32xf32>
    %152 = arith.mulf %139, %151 : vector<16x32xf32>
    %c0_69 = arith.constant 0 : index
    %c0_70 = arith.constant 0 : index
    %153 = vector.load %arg8[%c0_69, %c0_70] : memref<16x32xf32, #tpu.memory_space<vmem>>, vector<16x32xf32>
    %154 = arith.subf %152, %153 : vector<16x32xf32>
    %155 = vector.broadcast %135 : vector<16x1xf32> to vector<16x32xf32>
    %156 = arith.mulf %155, %154 : vector<16x32xf32>
    %157 = arith.addf %153, %156 : vector<16x32xf32>
    %c0_71 = arith.constant 0 : index
    %c0_72 = arith.constant 0 : index
    %158 = vector.load %arg8[%c0_71, %c0_72] : memref<16x32xf32, #tpu.memory_space<vmem>>, vector<16x32xf32>
    tpu.vector_store %arg8[%c0_71, %c0_72], %157 {strides = array<i32>} : memref<16x32xf32, #tpu.memory_space<vmem>>, vector<16x32xf32>,
    %c2 = arith.constant 2 : index
    %c0_73 = arith.constant 0 : index
    %159 = vector.load %arg3[%c2, %c0_73] : memref<3x32xf32, #tpu.memory_space<vmem>>, vector<1x32xf32>
    %160 = arith.addf %152, %1 : vector<16x32xf32>
    %161 = vector.broadcast %159 : vector<1x32xf32> to vector<16x32xf32>
    %162 = arith.addf %160, %161 : vector<16x32xf32>
    %cst_74 = arith.constant dense<0.000000e+00> : vector<16x128xf32>
    %163 = tpu.matmul %162, %2, %cst_74 {dimension_numbers = #tpu.dot_dimension_numbers<[1], [0], [0], [1], [0, 0, 1, 1], [], []>} : vector<16x32xf32>, vector<32x128xf32>, vector<16x128xf32> -> vector<16x128xf32>
    %164 = vector.extract_strided_slice %163 {offsets = [0, 0], sizes = [16, 1], strides = [1, 1]} : vector<16x128xf32> to vector<16x1xf32>
    %165 = vector.broadcast %3 : vector<1x1xf32> to vector<16x1xf32>
    %166 = arith.addf %164, %165 : vector<16x1xf32>
    %167 = arith.negf %166 : vector<16x1xf32>
    %168 = math.exp %167 : vector<16x1xf32>
    %cst_75 = arith.constant 1.000000e+00 : f32
    %169 = vector.broadcast %cst_75 : f32 to vector<16x1xf32>
    %170 = arith.addf %169, %168 : vector<16x1xf32>
    %171 = arith.divf %169, %170 : vector<16x1xf32>
    %c0_76 = arith.constant 0 : index
    %c0_77 = arith.constant 0 : index
    %172 = vector.load %arg9[%c0_76, %c0_77] : memref<16x1xf32, #tpu.memory_space<vmem>>, vector<16x1xf32>
    %cst_78 = arith.constant 1.000000e+00 : f32
    %173 = vector.broadcast %cst_78 : f32 to vector<16x1xf32>
    %174 = arith.cmpf olt, %127, %173 : vector<16x1xf32>
    %175 = arith.extui %174 : vector<16x1xi1> to vector<16x1xi32>
    %176 = arith.sitofp %175 : vector<16x1xi32> to vector<16x1xf32>
    %177 = arith.mulf %171, %176 : vector<16x1xf32>
    %178 = arith.addf %127, %177 : vector<16x1xf32>
    %cst_79 = arith.constant 0.899999976 : f32
    %179 = vector.broadcast %cst_79 : f32 to vector<16x1xf32>
    %180 = arith.cmpf ogt, %178, %179 : vector<16x1xf32>
    %181 = arith.extui %180 : vector<16x1xi1> to vector<16x1xi32>
    %182 = arith.sitofp %181 : vector<16x1xi32> to vector<16x1xf32>
    %183 = arith.mulf %182, %176 : vector<16x1xf32>
    %cst_80 = arith.constant 0.899999976 : f32
    %184 = vector.broadcast %cst_80 : f32 to vector<16x1xf32>
    %185 = arith.cmpf ole, %178, %184 : vector<16x1xf32>
    %186 = arith.extui %185 : vector<16x1xi1> to vector<16x1xi32>
    %187 = arith.sitofp %186 : vector<16x1xi32> to vector<16x1xf32>
    %188 = arith.mulf %187, %176 : vector<16x1xf32>
    %189 = arith.mulf %171, %188 : vector<16x1xf32>
    %190 = arith.addf %127, %189 : vector<16x1xf32>
    %cst_81 = arith.constant 1.000000e+00 : f32
    %191 = vector.broadcast %cst_81 : f32 to vector<16x1xf32>
    %192 = arith.subf %191, %190 : vector<16x1xf32>
    %193 = arith.mulf %183, %192 : vector<16x1xf32>
    %194 = arith.addf %172, %193 : vector<16x1xf32>
    %c0_82 = arith.constant 0 : index
    %c0_83 = arith.constant 0 : index
    %195 = vector.load %arg9[%c0_82, %c0_83] : memref<16x1xf32, #tpu.memory_space<vmem>>, vector<16x1xf32>
    tpu.vector_store %arg9[%c0_82, %c0_83], %194 {strides = array<i32>} : memref<16x1xf32, #tpu.memory_space<vmem>>, vector<16x1xf32>,
    %c0_84 = arith.constant 0 : index
    %c0_85 = arith.constant 0 : index
    %196 = vector.load %arg10[%c0_84, %c0_85] : memref<16x1xf32, #tpu.memory_space<vmem>>, vector<16x1xf32>
    %197 = arith.addf %196, %188 : vector<16x1xf32>
    %198 = arith.addf %197, %183 : vector<16x1xf32>
    %c0_86 = arith.constant 0 : index
    %c0_87 = arith.constant 0 : index
    %199 = vector.load %arg10[%c0_86, %c0_87] : memref<16x1xf32, #tpu.memory_space<vmem>>, vector<16x1xf32>
    tpu.vector_store %arg10[%c0_86, %c0_87], %198 {strides = array<i32>} : memref<16x1xf32, #tpu.memory_space<vmem>>, vector<16x1xf32>,
    %200 = arith.mulf %171, %188 : vector<16x1xf32>
    %201 = arith.mulf %183, %194 : vector<16x1xf32>
    %202 = arith.addf %200, %201 : vector<16x1xf32>
    %203 = arith.truncf %162 : vector<16x32xf32> to vector<16x32xbf16>
    %cst_88 = arith.constant dense<0.000000e+00> : vector<16x32xf32>
    %204 = tpu.matmul %203, %4, %cst_88 {dimension_numbers = #tpu.dot_dimension_numbers<[1], [0], [0], [1], [0, 0, 1, 1], [], []>} : vector<16x32xbf16>, vector<32x32xbf16>, vector<16x32xf32> -> vector<16x32xf32>
    %205 = vector.broadcast %5 : vector<1x32xf32> to vector<16x32xf32>
    %206 = arith.addf %204, %205 : vector<16x32xf32>
    %207 = arith.mulf %206, %206 : vector<16x32xf32>
    %208 = arith.mulf %206, %207 : vector<16x32xf32>
    %cst_89 = arith.constant 4.471500e-02 : f32
    %209 = vector.broadcast %cst_89 : f32 to vector<16x32xf32>
    %210 = arith.mulf %209, %208 : vector<16x32xf32>
    %211 = arith.addf %206, %210 : vector<16x32xf32>
    %cst_90 = arith.constant 0.797884583 : f32
    %212 = vector.broadcast %cst_90 : f32 to vector<16x32xf32>
    %213 = arith.mulf %212, %211 : vector<16x32xf32>
    %214 = math.tanh %213 : vector<16x32xf32>
    %cst_91 = arith.constant 1.000000e+00 : f32
    %215 = vector.broadcast %cst_91 : f32 to vector<16x32xf32>
    %216 = arith.addf %215, %214 : vector<16x32xf32>
    %cst_92 = arith.constant 5.000000e-01 : f32
    %217 = vector.broadcast %cst_92 : f32 to vector<16x32xf32>
    %218 = arith.mulf %217, %216 : vector<16x32xf32>
    %219 = arith.mulf %206, %218 : vector<16x32xf32>
    %c0_93 = arith.constant 0 : index
    %c0_94 = arith.constant 0 : index
    %220 = vector.load %arg8[%c0_93, %c0_94] : memref<16x32xf32, #tpu.memory_space<vmem>>, vector<16x32xf32>
    %221 = arith.subf %219, %220 : vector<16x32xf32>
    %222 = vector.broadcast %202 : vector<16x1xf32> to vector<16x32xf32>
    %223 = arith.mulf %222, %221 : vector<16x32xf32>
    %224 = arith.addf %220, %223 : vector<16x32xf32>
    %c0_95 = arith.constant 0 : index
    %c0_96 = arith.constant 0 : index
    %225 = vector.load %arg8[%c0_95, %c0_96] : memref<16x32xf32, #tpu.memory_space<vmem>>, vector<16x32xf32>
    tpu.vector_store %arg8[%c0_95, %c0_96], %224 {strides = array<i32>} : memref<16x32xf32, #tpu.memory_space<vmem>>, vector<16x32xf32>,
    return
  }
  func.func @transform_0(%arg0: i32) -> (i32, i32) {
    %c0_i32 = arith.constant 0 : i32
    %c0_i32_0 = arith.constant 0 : i32
    return %arg0, %c0_i32 : i32, i32
  }
  func.func @transform_1(%arg0: i32) -> (i32, i32) {
    %c0_i32 = arith.constant 0 : i32
    %c0_i32_0 = arith.constant 0 : i32
    return %arg0, %c0_i32 : i32, i32
  }
  func.func @transform_2(%arg0: i32) -> (i32, i32) {
    %c0_i32 = arith.constant 0 : i32
    %c0_i32_0 = arith.constant 0 : i32
    %c0_i32_1 = arith.constant 0 : i32
    return %c0_i32, %c0_i32_0 : i32, i32
  }
  func.func @transform_3(%arg0: i32) -> (i32, i32) {
    %c0_i32 = arith.constant 0 : i32
    %c0_i32_0 = arith.constant 0 : i32
    %c0_i32_1 = arith.constant 0 : i32
    return %c0_i32, %c0_i32_0 : i32, i32
  }
  func.func @transform_4(%arg0: i32) -> (i32, i32) {
    %c0_i32 = arith.constant 0 : i32
    %c0_i32_0 = arith.constant 0 : i32
    %c0_i32_1 = arith.constant 0 : i32
    return %c0_i32, %c0_i32_0 : i32, i32
  }
  func.func @transform_5(%arg0: i32) -> (i32, i32) {
    %c0_i32 = arith.constant 0 : i32
    %c0_i32_0 = arith.constant 0 : i32
    %c0_i32_1 = arith.constant 0 : i32
    return %c0_i32, %c0_i32_0 : i32, i32
  }
  func.func @transform_6(%arg0: i32) -> (i32, i32) {
    %c0_i32 = arith.constant 0 : i32
    %c0_i32_0 = arith.constant 0 : i32
    %c0_i32_1 = arith.constant 0 : i32
    return %c0_i32, %c0_i32_0 : i32, i32
  }
  func.func @transform_7(%arg0: i32) -> (i32, i32) {
    %c0_i32 = arith.constant 0 : i32
    %c0_i32_0 = arith.constant 0 : i32
    return %arg0, %c0_i32 : i32, i32
  }
  func.func @transform_8(%arg0: i32) -> (i32, i32) {
    %c0_i32 = arith.constant 0 : i32
    %c0_i32_0 = arith.constant 0 : i32
    return %arg0, %c0_i32 : i32, i32
  }
  func.func @transform_9(%arg0: i32) -> (i32, i32) {
    %c0_i32 = arith.constant 0 : i32
    %c0_i32_0 = arith.constant 0 : i32
    return %arg0, %c0_i32 : i32, i32
  }
}

</mosaic_0001>

<llo_original>
// kernel: tpu_custom_call.1
$region0: #{tpu_custom_call.1}
  #allocation0 [shape = 'u32[]', space=smem, size = 0x4, offset = 0x4, fixed_abs, tag = 'smem constant byte address 0x4 - core index']
  #allocation1 [shape = 'u32[72,128]{1,0:T(1,128)}', space=vmem, size = 0x9000, scoped, tag = 'internal scratch']
  #allocation2 [shape = 'f32[1,1]{1,0:T(1,128)S(1)}', space=vmem, size = 0x200, scoped, tag = 'scoped memory for tpu_custom_call.1']
  %s0 = inlined_call_operand.hbm [shape: f32[16,32], index: 0, kind: input, shape index: {}]
  %s1 = inlined_call_operand.hbm [shape: f32[16,32], index: 1, kind: input, shape index: {}]
  %s2 = inlined_call_operand.hbm [shape: f32[3,32], index: 2, kind: input, shape index: {}]
  %s3 = inlined_call_operand.hbm [shape: f32[32,128], index: 3, kind: input, shape index: {}]
  %s4 = inlined_call_operand.<no memory space> [shape: f32[1,1], index: 4, kind: input, shape index: {}]
  %s5 = inlined_call_operand.hbm [shape: bf16[32,32], index: 5, kind: input, shape index: {}]
  %s6 = inlined_call_operand.vmem [shape: f32[1,32], index: 6, kind: input, shape index: {}]
  %s7 = inlined_call_operand.hbm [shape: f32[16,32], index: 7, kind: output, shape index: {0}]
  %s8 = inlined_call_operand.vmem [shape: f32[16,1], index: 8, kind: output, shape index: {1}]
  %s9 = inlined_call_operand.vmem [shape: f32[16,1], index: 9, kind: output, shape index: {2}]
  %10 = xla_tuple %s7, %s8, %s9
  %s11 = sld [smem:[#allocation0]]
  $region74: #{tpu_custom_call.1} parent=0
    _
  %s13 = ssub.s32 1, %s11
  %s14 = scalar_select 0, %s13, %s11
  %v15 = vstv %s4
  %16 = vst [vmem:[#allocation2] sm:$0x1] %v15
  $region1: #{tpu_custom_call.1} parent=0
    #allocation3 [shape = 'u8[8192]{0}', space=vmem, size = 0x2000, scoped, tag = 'input window, operand 0, single buffered']
    #allocation4 [shape = 's32[1]{0}', space=sflag, size = 0x4, scoped, tag = 'scoped memory for tpu_custom_call.1']
    #allocation5 [shape = 's32[1]{0}', space=sflag, size = 0x4, scoped, tag = 'scoped memory for tpu_custom_call.1']
    #allocation6 [shape = 'u8[8192]{0}', space=vmem, size = 0x2000, scoped, tag = 'input window, operand 1, single buffered']
    #allocation7 [shape = 's32[1]{0}', space=sflag, size = 0x4, scoped, tag = 'scoped memory for tpu_custom_call.1']
    #allocation8 [shape = 'u8[2048]{0}', space=vmem, size = 0x800, scoped, tag = 'input window, operand 2, single buffered']
    #allocation9 [shape = 'u8[16384]{0}', space=vmem, size = 0x4000, scoped, tag = 'input window, operand 3, single buffered']
    #allocation10 [shape = 's32[1]{0}', space=sflag, size = 0x4, scoped, tag = 'scoped memory for tpu_custom_call.1']
    #allocation11 [shape = 'u8[8192]{0}', space=vmem, size = 0x2000, scoped, tag = 'input window, operand 5, single buffered']
    #allocation12 [shape = 'u8[8192]{0}', space=vmem, size = 0x2000, scoped, tag = 'output window, operand 0, single buffered']
    %17 = vsyncpa [#allocation4], 0
    %18 = vsyncpa [#allocation7], 0
    %19 = vsyncpa [#allocation10], 0
    %20 = vsyncpa [#allocation5], 0
    // Predicated region
    $region2: #{tpu_custom_call.1} parent=1 // pred_check
      _
    $region3: #{tpu_custom_call.1} parent=1 // pred_check_branch
      %22 = sbr.rel (0) target = $region5
    $region4: #{tpu_custom_call.1} parent=1 // pred_region
      %24 = vsyncadd [#allocation4], 0
      %s25 = sshll.u32 %s0, 4
      %s26 = int_to_ptr.hbm [resolvable:$true] %s25
      %s27 = sshll.u32 [#allocation3], 4
      %s28 = int_to_ptr.vmem [resolvable:$true] %s27
      %33 = dma.hbm_to_vmem [thread:$0]  %s26, 256, %s28, [#allocation4], 128, 128, 8
    $region5: #{tpu_custom_call.1} parent=1 // pred_fallthru
      _
    // Predicated region
    $region6: #{tpu_custom_call.1} parent=1 // pred_check
      _
    $region7: #{tpu_custom_call.1} parent=1 // pred_check_branch
      %35 = sbr.rel (0) target = $region9
    $region8: #{tpu_custom_call.1} parent=1 // pred_region
      %37 = vsyncadd [#allocation7], 0
      %s38 = sshll.u32 %s1, 4
      %s39 = int_to_ptr.hbm [resolvable:$true] %s38
      %s40 = sshll.u32 [#allocation6], 4
      %s41 = int_to_ptr.vmem [resolvable:$true] %s40
      %46 = dma.hbm_to_vmem [thread:$0]  %s39, 256, %s41, [#allocation7], 128, 128, 8
    $region9: #{tpu_custom_call.1} parent=1 // pred_fallthru
      _
    // Predicated region
    $region10: #{tpu_custom_call.1} parent=1 // pred_check
      _
    $region11: #{tpu_custom_call.1} parent=1 // pred_check_branch
      %48 = sbr.rel (0) target = $region13
    $region12: #{tpu_custom_call.1} parent=1 // pred_region
      %50 = vsyncadd [#allocation7], 0
      %s52 = sshll.u32 %s2, 4
      %s53 = int_to_ptr.hbm [resolvable:$true] %s52
      %s54 = sshll.u32 [#allocation8], 4
      %s55 = int_to_ptr.vmem [resolvable:$true] %s54
      %57 = dma.hbm_to_vmem [thread:$0]  %s53, 64, %s55, [#allocation7]
    $region13: #{tpu_custom_call.1} parent=1 // pred_fallthru
      _
    // Predicated region
    $region14: #{tpu_custom_call.1} parent=1 // pred_check
      _
    $region15: #{tpu_custom_call.1} parent=1 // pred_check_branch
      %59 = sbr.rel (0) target = $region17
    $region16: #{tpu_custom_call.1} parent=1 // pred_region
      %61 = vsyncadd [#allocation10], 0
      %s62 = sshll.u32 %s3, 4
      %s63 = int_to_ptr.hbm [resolvable:$true] %s62
      %s64 = sshll.u32 [#allocation9], 4
      %s65 = int_to_ptr.vmem [resolvable:$true] %s64
      %70 = dma.hbm_to_vmem [thread:$0]  %s63, 512, %s65, [#allocation10], 128, 128, 8
    $region17: #{tpu_custom_call.1} parent=1 // pred_fallthru
      _
    // Predicated region
    $region18: #{tpu_custom_call.1} parent=1 // pred_check
      _
    $region19: #{tpu_custom_call.1} parent=1 // pred_check_branch
      %72 = sbr.rel (0) target = $region21
    $region20: #{tpu_custom_call.1} parent=1 // pred_region
      _
    $region21: #{tpu_custom_call.1} parent=1 // pred_fallthru
      _
    // Predicated region
    $region22: #{tpu_custom_call.1} parent=1 // pred_check
      _
    $region23: #{tpu_custom_call.1} parent=1 // pred_check_branch
      %74 = sbr.rel (0) target = $region25
    $region24: #{tpu_custom_call.1} parent=1 // pred_region
      %76 = vsyncadd [#allocation10], 0
      %s77 = sshll.u32 %s5, 4
      %s78 = int_to_ptr.hbm [resolvable:$true] %s77
      %s79 = sshll.u32 [#allocation11], 4
      %s80 = int_to_ptr.vmem [resolvable:$true] %s79
      %85 = dma.hbm_to_vmem [thread:$0]  %s78, 256, %s80, [#allocation10], 64, 64, 4
    $region25: #{tpu_custom_call.1} parent=1 // pred_fallthru
      _
    // Predicated region
    $region26: #{tpu_custom_call.1} parent=1 // pred_check
      _
    $region27: #{tpu_custom_call.1} parent=1 // pred_check_branch
      %87 = sbr.rel (0) target = $region29
    $region28: #{tpu_custom_call.1} parent=1 // pred_region
      _
    $region29: #{tpu_custom_call.1} parent=1 // pred_fallthru
      _
    // Predicated region
    $region30: #{tpu_custom_call.1} parent=1 // pred_check
      _
    $region31: #{tpu_custom_call.1} parent=1 // pred_check_branch
      %89 = sbr.rel (0) target = $region33
    $region32: #{tpu_custom_call.1} parent=1 // pred_region
      %91 = dma.done [#allocation4], 256
    $region33: #{tpu_custom_call.1} parent=1 // pred_fallthru
      _
    // Predicated region
    $region34: #{tpu_custom_call.1} parent=1 // pred_check
      _
    $region35: #{tpu_custom_call.1} parent=1 // pred_check_branch
      %93 = sbr.rel (0) target = $region37
    $region36: #{tpu_custom_call.1} parent=1 // pred_region
      %95 = dma.done [#allocation7], 256
    $region37: #{tpu_custom_call.1} parent=1 // pred_fallthru
      _
    // Predicated region
    $region38: #{tpu_custom_call.1} parent=1 // pred_check
      _
    $region39: #{tpu_custom_call.1} parent=1 // pred_check_branch
      %97 = sbr.rel (0) target = $region41
    $region40: #{tpu_custom_call.1} parent=1 // pred_region
      %99 = dma.done [#allocation7], 64
    $region41: #{tpu_custom_call.1} parent=1 // pred_fallthru
      _
    // Predicated region
    $region42: #{tpu_custom_call.1} parent=1 // pred_check
      _
    $region43: #{tpu_custom_call.1} parent=1 // pred_check_branch
      %101 = sbr.rel (0) target = $region45
    $region44: #{tpu_custom_call.1} parent=1 // pred_region
      %103 = dma.done [#allocation10], 512
    $region45: #{tpu_custom_call.1} parent=1 // pred_fallthru
      _
    // Predicated region
    $region46: #{tpu_custom_call.1} parent=1 // pred_check
      _
    $region47: #{tpu_custom_call.1} parent=1 // pred_check_branch
      %105 = sbr.rel (0) target = $region49
    $region48: #{tpu_custom_call.1} parent=1 // pred_region
      %107 = dma.done [#allocation10], 256
    $region49: #{tpu_custom_call.1} parent=1 // pred_fallthru
      _
    %v109 = vld [vmem:[#allocation3] sm:$0xff]
    %v110 = vld [vmem:[#allocation3 + $0x8] sm:$0xff]
    %v111 = vld [vmem:[#allocation6] sm:$0xff]
    %v112 = vld [vmem:[#allocation6 + $0x8] sm:$0xff]
    %v113 = vld [vmem:[#allocation9] sm:$0xff]
    %v114 = vld [vmem:[#allocation9 + $0x8] sm:$0xff]
    %v115 = vld [vmem:[#allocation9 + $0x10] sm:$0xff]
    %v116 = vld [vmem:[#allocation9 + $0x18] sm:$0xff]
    %v117 = vld [vmem:[#allocation2] sm:$0x1]
    %v118 = vld [vmem:[#allocation11] sm:$0xf]
    %v119 = vld [vmem:[#allocation11 + $0x4] sm:$0xf]
    %v120 = vld [vmem:[#allocation11 + $0x8] sm:$0xf]
    %v121 = vld [vmem:[#allocation11 + $0xc] sm:$0xf]
    %v122 = vld [vmem:[%s6] sm:$0x1]
    %vm123 = vcmask 261120
    %124 = vst.msk [vmem:[#allocation12] sm:$0xff] %vm123, 0.0
    %125 = vst.msk [vmem:[#allocation12 + $0x8] sm:$0xff] %vm123, 0.0
    %vm126 = vcmask 7168
    %127 = vst.msk [vmem:[%s8] sm:$0xff] %vm126, 0.0
    %128 = vst.msk [vmem:[%s8 + $0x8] sm:$0xff] %vm126, 0.0
    %129 = vst.msk [vmem:[%s9] sm:$0xff] %vm126, 0.0
    %130 = vst.msk [vmem:[%s9 + $0x8] sm:$0xff] %vm126, 0.0
    %v131 = vld [vmem:[#allocation8] sm:$0x1]
    %v132 = vadd.f32 %v109, %v111
    %v133 = vadd.f32 %v110, %v112
    %v134 = vperm.slane %v131, 0
    %v135 = vadd.f32 %v132, %v134
    %v136 = vadd.f32 %v133, %v134
    %v138 = vsel %vm123, %v135, 0
    %v141 = vsel %vm123, %v136, 0
    %143 = vmatpush.msra.mxu0 0.0
    %144 = vmatpush.msra.mxu0 0.0
    %145 = vmatpush.msra.mxu0 0.0
    %146 = vmatpush.msra.mxu0 0.0
    %147 = vmatpush.msra.mxu0 0.0
    %148 = vmatpush.msra.mxu0 0.0
    %149 = vmatpush.msra.mxu0 0.0
    %150 = vmatpush.msra.mxu0 0.0
    %151 = vmatpush.msra.mxu0 0.0
    %152 = vmatpush.msra.mxu0 0.0
    %153 = vmatpush.msra.mxu0 0.0
    %154 = vmatpush.msra.mxu0 0.0
    %155 = vmatpush.msra.mxu0 %v116
    %156 = vmatpush.msra.mxu0 %v115
    %157 = vmatpush.msra.mxu0 %v114
    %158 = vmatpush.msra.mxu0 %v113
    %159 = vmatmul.f32.gmra.mxu0 %v138
    %v160 = vpop.f32.mrf.mxu0
    %v161 = vadd.f32 0.0, %v160
    %162 = vmatmul.f32.gmra.mxu0 %v141
    %v163 = vpop.f32.mrf.mxu0
    %v164 = vadd.f32 0.0, %v163
    %165 = vdwg.mxu0
    %v167 = vperm.slane %v117, 0
    %v169 = vadd.f32 %v161, %v167
    %v170 = vadd.f32 %v164, %v167
    %v171 = vxor.u32 %v169, 2147483648
    %v172 = vxor.u32 %v170, 2147483648
    %v173 = vmul.f32 %v171, 1.442695
    %v174 = vpow.pop %v173
    %v175 = vmul.f32 %v172, 1.442695
    %v176 = vpow.pop %v175
    %v177 = vadd.f32 %v174, 1.0
    %v178 = vadd.f32 %v176, 1.0
    %v179 = vrcp.pop %v177
    %v180 = vmul.f32 %v177, %v179
    %v181 = vsub.f32 1.0, %v180
    %v182 = vmul.f32 %v179, %v181
    %v183 = vadd.f32 %v179, %v182
    %vm184 = vweird.f32 %v177
    %vm185 = vweird.f32 %v179
    %vm186 = vmor %vm184, %vm185
    %v187 = vsel %vm186, %v179, %v183
    %v188 = vand.u32 2147483647, %v177
    %vm189 = vcmp.eq.f32.partialorder %v188, 8.507059e+37
    %v190 = vand.u32 %v177, 2147483648
    %v191 = vor.u32 1.1754944e-38, %v190
    %v192 = vsel %vm189, %v191, %v187
    %v193 = vmul.f32 1.0, %v192
    %v194 = vrcp.pop %v178
    %v195 = vmul.f32 %v178, %v194
    %v196 = vsub.f32 1.0, %v195
    %v197 = vmul.f32 %v194, %v196
    %v198 = vadd.f32 %v194, %v197
    %vm199 = vweird.f32 %v178
    %vm200 = vweird.f32 %v194
    %vm201 = vmor %vm199, %vm200
    %v202 = vsel %vm201, %v194, %v198
    %v203 = vand.u32 2147483647, %v178
    %vm204 = vcmp.eq.f32.partialorder %v203, 8.507059e+37
    %v205 = vand.u32 %v178, 2147483648
    %v206 = vor.u32 1.1754944e-38, %v205
    %v207 = vsel %vm204, %v206, %v202
    %v208 = vmul.f32 1.0, %v207
    %v209 = vld [vmem:[%s8] sm:$0xff]
    %v210 = vld [vmem:[%s8 + $0x8] sm:$0xff]
    %vm211 = vcmp.lt.f32.partialorder 0.0, 1.0
    %v212 = vsel %vm211, 1, 0
    %v213 = vcvt.s32.f32 %v212
    %v214 = vmul.f32 %v193, %v213
    %v215 = vmul.f32 %v208, %v213
    %v216 = vadd.f32 %v214, 0.0
    %v217 = vadd.f32 %v215, 0.0
    %vm218 = vcmp.gt.f32.partialorder %v216, 0.9
    %vm219 = vcmp.gt.f32.partialorder %v217, 0.9
    %v220 = vsel %vm218, 1, 0
    %v221 = vsel %vm219, 1, 0
    %v222 = vcvt.s32.f32 %v220
    %v223 = vcvt.s32.f32 %v221
    %v224 = vmul.f32 %v222, %v213
    %v225 = vmul.f32 %v223, %v213
    %vm226 = vcmp.le.f32.partialorder %v216, 0.9
    %vm227 = vcmp.le.f32.partialorder %v217, 0.9
    %v228 = vsel %vm226, 1, 0
    %v229 = vsel %vm227, 1, 0
    %v230 = vcvt.s32.f32 %v228
    %v231 = vcvt.s32.f32 %v229
    %v232 = vmul.f32 %v230, %v213
    %v233 = vmul.f32 %v231, %v213
    %v234 = vmul.f32 %v193, %v232
    %v235 = vmul.f32 %v208, %v233
    %v236 = vadd.f32 %v234, 0.0
    %v237 = vadd.f32 %v235, 0.0
    %v238 = vsub.f32 1.0, %v236
    %v239 = vsub.f32 1.0, %v237
    %v240 = vmul.f32 %v224, %v238
    %v241 = vmul.f32 %v225, %v239
    %v242 = vadd.f32 %v209, %v240
    %v243 = vadd.f32 %v210, %v241
    %v244 = vmul.f32 %v224, %v242
    %v245 = vmul.f32 %v225, %v243
    %v246 = vadd.f32 %v236, %v244
    %v247 = vadd.f32 %v237, %v245
    %vm248 = vcmp.gt.f32.partialorder %v224, 0.0
    %vm249 = vcmp.gt.f32.partialorder %v225, 0.0
    %v250 = vsel %vm248, 1.0, %v246
    %v251 = vsel %vm249, 1.0, %v247
    %252 = vst.msk [vmem:[%s8] sm:$0xff] %vm126, %v242
    %253 = vst.msk [vmem:[%s8 + $0x8] sm:$0xff] %vm126, %v243
    %v254 = vld [vmem:[%s9] sm:$0xff]
    %v255 = vld [vmem:[%s9 + $0x8] sm:$0xff]
    %v256 = vadd.f32 %v254, %v232
    %v257 = vadd.f32 %v255, %v233
    %v258 = vadd.f32 %v256, %v224
    %v259 = vadd.f32 %v257, %v225
    %260 = vst.msk [vmem:[%s9] sm:$0xff] %vm126, %v258
    %261 = vst.msk [vmem:[%s9 + $0x8] sm:$0xff] %vm126, %v259
    %v262 = vadd.f32 %v234, %v244
    %v263 = vadd.f32 %v235, %v245
    %v264 = vpack.c.bf16 %v136, %v135
    %v266 = vperm.slane %v122, 0
    %v272 = vunpack.c.l.b16 %v118
    %v273 = vunpack.c.l.b16 %v119
    %v274 = vunpack.c.l.b16 %v120
    %v275 = vunpack.c.l.b16 %v121
    %v276 = vpack.c.b16 %v273, %v272
    %v277 = vpack.c.b16 %v275, %v274
    %v281 = vsel %vm123, %v264, 0
    %283 = vmatpush.bf16.msra.mxu0 0
    %284 = vmatpush.bf16.msra.mxu0 0
    %285 = vmatpush.bf16.msra.mxu0 0
    %286 = vmatpush.bf16.msra.mxu0 0
    %287 = vmatpush.bf16.msra.mxu0 0
    %288 = vmatpush.bf16.msra.mxu0 0
    %289 = vmatpush.bf16.msra.mxu0 %v277
    %290 = vmatpush.bf16.msra.mxu0 %v276
    %291 = vmatmul.bf16.gmra.mxu0 %v281
    %v292 = vpop.f32.mrf.mxu0
    %v293 = vadd.f32 %v266, %v292
    %v294 = vpop.f32.mrf.mxu0
    %v295 = vadd.f32 %v266, %v294
    %296 = vdwg.mxu0
    %v297 = vmul.f32 %v293, %v293
    %v298 = vmul.f32 %v295, %v295
    %v299 = vmul.f32 %v293, %v297
    %v300 = vmul.f32 %v295, %v298
    %v301 = vmul.f32 %v299, 0.044715
    %v302 = vmul.f32 %v300, 0.044715
    %v303 = vadd.f32 %v293, %v301
    %v304 = vadd.f32 %v295, %v302
    %v305 = vmul.f32 %v303, 0.7978846
    %v306 = vmul.f32 %v304, 0.7978846
    %v307 = vtanh.pop %v305
    %v308 = vtanh.pop %v306
    %v309 = vadd.f32 %v307, 1.0
    %v310 = vadd.f32 %v308, 1.0
    %v311 = vmul.f32 %v309, 0.5
    %v312 = vmul.f32 %v310, 0.5
    %v313 = vmul.f32 %v293, %v311
    %v314 = vmul.f32 %v295, %v312
    %v315 = vld [vmem:[#allocation12] sm:$0xff]
    %v316 = vld [vmem:[#allocation12 + $0x8] sm:$0xff]
    %v317 = vsub.f32 %v313, %v315
    %v318 = vsub.f32 %v314, %v316
    %320 = vset.pattern.permute.xlu0 0
    %321 = vperm.xlu0 %320, %v262
    %v322 = vpop.permute.xlu0 %321
    %325 = vset.pattern.permute.xlu0 0
    %326 = vperm.xlu0 %325, %v263
    %v327 = vpop.permute.xlu0 %326
    %v329 = vmul.f32 %v322, %v317
    %v330 = vmul.f32 %v327, %v318
    %v331 = vadd.f32 %v315, %v329
    %v332 = vadd.f32 %v316, %v330
    %333 = vst.msk [vmem:[#allocation12] sm:$0xff] %vm123, %v331
    %334 = vst.msk [vmem:[#allocation12 + $0x8] sm:$0xff] %vm123, %v332
    %v335 = vld [vmem:[#allocation8 + $0x1] sm:$0x1]
    %v336 = vadd.f32 %v313, %v111
    %v337 = vadd.f32 %v314, %v112
    %v338 = vperm.slane %v335, 0
    %v339 = vadd.f32 %v336, %v338
    %v340 = vadd.f32 %v337, %v338
    %v342 = vsel %vm123, %v339, 0
    %v345 = vsel %vm123, %v340, 0
    %347 = vmatpush.msra.mxu0 0.0
    %348 = vmatpush.msra.mxu0 0.0
    %349 = vmatpush.msra.mxu0 0.0
    %350 = vmatpush.msra.mxu0 0.0
    %351 = vmatpush.msra.mxu0 0.0
    %352 = vmatpush.msra.mxu0 0.0
    %353 = vmatpush.msra.mxu0 0.0
    %354 = vmatpush.msra.mxu0 0.0
    %355 = vmatpush.msra.mxu0 0.0
    %356 = vmatpush.msra.mxu0 0.0
    %357 = vmatpush.msra.mxu0 0.0
    %358 = vmatpush.msra.mxu0 0.0
    %359 = vmatpush.msra.mxu0 %v116
    %360 = vmatpush.msra.mxu0 %v115
    %361 = vmatpush.msra.mxu0 %v114
    %362 = vmatpush.msra.mxu0 %v113
    %363 = vmatmul.f32.gmra.mxu0 %v342
    %v364 = vpop.f32.mrf.mxu0
    %v365 = vadd.f32 0.0, %v364
    %366 = vmatmul.f32.gmra.mxu0 %v345
    %v367 = vpop.f32.mrf.mxu0
    %v368 = vadd.f32 0.0, %v367
    %369 = vdwg.mxu0
    %v370 = vadd.f32 %v365, %v167
    %v371 = vadd.f32 %v368, %v167
    %v372 = vxor.u32 %v370, 2147483648
    %v373 = vxor.u32 %v371, 2147483648
    %v374 = vmul.f32 %v372, 1.442695
    %v375 = vpow.pop %v374
    %v376 = vmul.f32 %v373, 1.442695
    %v377 = vpow.pop %v376
    %v378 = vadd.f32 %v375, 1.0
    %v379 = vadd.f32 %v377, 1.0
    %v380 = vrcp.pop %v378
    %v381 = vmul.f32 %v378, %v380
    %v382 = vsub.f32 1.0, %v381
    %v383 = vmul.f32 %v380, %v382
    %v384 = vadd.f32 %v380, %v383
    %vm385 = vweird.f32 %v378
    %vm386 = vweird.f32 %v380
    %vm387 = vmor %vm385, %vm386
    %v388 = vsel %vm387, %v380, %v384
    %v389 = vand.u32 2147483647, %v378
    %vm390 = vcmp.eq.f32.partialorder %v389, 8.507059e+37
    %v391 = vand.u32 %v378, 2147483648
    %v392 = vor.u32 1.1754944e-38, %v391
    %v393 = vsel %vm390, %v392, %v388
    %v394 = vmul.f32 1.0, %v393
    %v395 = vrcp.pop %v379
    %v396 = vmul.f32 %v379, %v395
    %v397 = vsub.f32 1.0, %v396
    %v398 = vmul.f32 %v395, %v397
    %v399 = vadd.f32 %v395, %v398
    %vm400 = vweird.f32 %v379
    %vm401 = vweird.f32 %v395
    %vm402 = vmor %vm400, %vm401
    %v403 = vsel %vm402, %v395, %v399
    %v404 = vand.u32 2147483647, %v379
    %vm405 = vcmp.eq.f32.partialorder %v404, 8.507059e+37
    %v406 = vand.u32 %v379, 2147483648
    %v407 = vor.u32 1.1754944e-38, %v406
    %v408 = vsel %vm405, %v407, %v403
    %v409 = vmul.f32 1.0, %v408
    %v410 = vld [vmem:[%s8] sm:$0xff]
    %v411 = vld [vmem:[%s8 + $0x8] sm:$0xff]
    %vm412 = vcmp.lt.f32.partialorder %v250, 1.0
    %vm413 = vcmp.lt.f32.partialorder %v251, 1.0
    %v414 = vsel %vm412, 1, 0
    %v415 = vsel %vm413, 1, 0
    %v416 = vcvt.s32.f32 %v414
    %v417 = vcvt.s32.f32 %v415
    %v418 = vmul.f32 %v394, %v416
    %v419 = vmul.f32 %v409, %v417
    %v420 = vadd.f32 %v250, %v418
    %v421 = vadd.f32 %v251, %v419
    %vm422 = vcmp.gt.f32.partialorder %v420, 0.9
    %vm423 = vcmp.gt.f32.partialorder %v421, 0.9
    %v424 = vsel %vm422, 1, 0
    %v425 = vsel %vm423, 1, 0
    %v426 = vcvt.s32.f32 %v424
    %v427 = vcvt.s32.f32 %v425
    %v428 = vmul.f32 %v426, %v416
    %v429 = vmul.f32 %v427, %v417
    %vm430 = vcmp.le.f32.partialorder %v420, 0.9
    %vm431 = vcmp.le.f32.partialorder %v421, 0.9
    %v432 = vsel %vm430, 1, 0
    %v433 = vsel %vm431, 1, 0
    %v434 = vcvt.s32.f32 %v432
    %v435 = vcvt.s32.f32 %v433
    %v436 = vmul.f32 %v434, %v416
    %v437 = vmul.f32 %v435, %v417
    %v438 = vmul.f32 %v394, %v436
    %v439 = vmul.f32 %v409, %v437
    %v440 = vadd.f32 %v250, %v438
    %v441 = vadd.f32 %v251, %v439
    %v442 = vsub.f32 1.0, %v440
    %v443 = vsub.f32 1.0, %v441
    %v444 = vmul.f32 %v428, %v442
    %v445 = vmul.f32 %v429, %v443
    %v446 = vadd.f32 %v410, %v444
    %v447 = vadd.f32 %v411, %v445
    %v448 = vmul.f32 %v428, %v446
    %v449 = vmul.f32 %v429, %v447
    %v450 = vadd.f32 %v440, %v448
    %v451 = vadd.f32 %v441, %v449
    %vm452 = vcmp.gt.f32.partialorder %v428, 0.0
    %vm453 = vcmp.gt.f32.partialorder %v429, 0.0
    %v454 = vsel %vm452, 1.0, %v450
    %v455 = vsel %vm453, 1.0, %v451
    %456 = vst.msk [vmem:[%s8] sm:$0xff] %vm126, %v446
    %457 = vst.msk [vmem:[%s8 + $0x8] sm:$0xff] %vm126, %v447
    %v458 = vld [vmem:[%s9] sm:$0xff]
    %v459 = vld [vmem:[%s9 + $0x8] sm:$0xff]
    %v460 = vadd.f32 %v458, %v436
    %v461 = vadd.f32 %v459, %v437
    %v462 = vadd.f32 %v460, %v428
    %v463 = vadd.f32 %v461, %v429
    %464 = vst.msk [vmem:[%s9] sm:$0xff] %vm126, %v462
    %465 = vst.msk [vmem:[%s9 + $0x8] sm:$0xff] %vm126, %v463
    %v466 = vadd.f32 %v438, %v448
    %v467 = vadd.f32 %v439, %v449
    %v468 = vpack.c.bf16 %v340, %v339
    %v470 = vsel %vm123, %v468, 0
    %472 = vmatpush.bf16.msra.mxu0 0
    %473 = vmatpush.bf16.msra.mxu0 0
    %474 = vmatpush.bf16.msra.mxu0 0
    %475 = vmatpush.bf16.msra.mxu0 0
    %476 = vmatpush.bf16.msra.mxu0 0
    %477 = vmatpush.bf16.msra.mxu0 0
    %478 = vmatpush.bf16.msra.mxu0 %v277
    %479 = vmatpush.bf16.msra.mxu0 %v276
    %480 = vmatmul.bf16.gmra.mxu0 %v470
    %v481 = vpop.f32.mrf.mxu0
    %v482 = vadd.f32 %v266, %v481
    %v483 = vpop.f32.mrf.mxu0
    %v484 = vadd.f32 %v266, %v483
    %485 = vdwg.mxu0
    %v486 = vmul.f32 %v482, %v482
    %v487 = vmul.f32 %v484, %v484
    %v488 = vmul.f32 %v482, %v486
    %v489 = vmul.f32 %v484, %v487
    %v490 = vmul.f32 %v488, 0.044715
    %v491 = vmul.f32 %v489, 0.044715
    %v492 = vadd.f32 %v482, %v490
    %v493 = vadd.f32 %v484, %v491
    %v494 = vmul.f32 %v492, 0.7978846
    %v495 = vmul.f32 %v493, 0.7978846
    %v496 = vtanh.pop %v494
    %v497 = vtanh.pop %v495
    %v498 = vadd.f32 %v496, 1.0
    %v499 = vadd.f32 %v497, 1.0
    %v500 = vmul.f32 %v498, 0.5
    %v501 = vmul.f32 %v499, 0.5
    %v502 = vmul.f32 %v482, %v500
    %v503 = vmul.f32 %v484, %v501
    %v504 = vld [vmem:[#allocation12] sm:$0xff]
    %v505 = vld [vmem:[#allocation12 + $0x8] sm:$0xff]
    %v506 = vsub.f32 %v502, %v504
    %v507 = vsub.f32 %v503, %v505
    %509 = vset.pattern.permute.xlu0 0
    %510 = vperm.xlu0 %509, %v466
    %v511 = vpop.permute.xlu0 %510
    %514 = vset.pattern.permute.xlu0 0
    %515 = vperm.xlu0 %514, %v467
    %v516 = vpop.permute.xlu0 %515
    %v518 = vmul.f32 %v511, %v506
    %v519 = vmul.f32 %v516, %v507
    %v520 = vadd.f32 %v504, %v518
    %v521 = vadd.f32 %v505, %v519
    %522 = vst.msk [vmem:[#allocation12] sm:$0xff] %vm123, %v520
    %523 = vst.msk [vmem:[#allocation12 + $0x8] sm:$0xff] %vm123, %v521
    %v524 = vld [vmem:[#allocation8 + $0x2] sm:$0x1]
    %v525 = vadd.f32 %v502, %v111
    %v526 = vadd.f32 %v503, %v112
    %v527 = vperm.slane %v524, 0
    %v528 = vadd.f32 %v525, %v527
    %v529 = vadd.f32 %v526, %v527
    %v531 = vsel %vm123, %v528, 0
    %v534 = vsel %vm123, %v529, 0
    %536 = vmatpush.msra.mxu0 0.0
    %537 = vmatpush.msra.mxu0 0.0
    %538 = vmatpush.msra.mxu0 0.0
    %539 = vmatpush.msra.mxu0 0.0
    %540 = vmatpush.msra.mxu0 0.0
    %541 = vmatpush.msra.mxu0 0.0
    %542 = vmatpush.msra.mxu0 0.0
    %543 = vmatpush.msra.mxu0 0.0
    %544 = vmatpush.msra.mxu0 0.0
    %545 = vmatpush.msra.mxu0 0.0
    %546 = vmatpush.msra.mxu0 0.0
    %547 = vmatpush.msra.mxu0 0.0
    %548 = vmatpush.msra.mxu0 %v116
    %549 = vmatpush.msra.mxu0 %v115
    %550 = vmatpush.msra.mxu0 %v114
    %551 = vmatpush.msra.mxu0 %v113
    %552 = vmatmul.f32.gmra.mxu0 %v531
    %v553 = vpop.f32.mrf.mxu0
    %v554 = vadd.f32 0.0, %v553
    %555 = vmatmul.f32.gmra.mxu0 %v534
    %v556 = vpop.f32.mrf.mxu0
    %v557 = vadd.f32 0.0, %v556
    %558 = vdwg.mxu0
    %v559 = vadd.f32 %v554, %v167
    %v560 = vadd.f32 %v557, %v167
    %v561 = vxor.u32 %v559, 2147483648
    %v562 = vxor.u32 %v560, 2147483648
    %v563 = vmul.f32 %v561, 1.442695
    %v564 = vpow.pop %v563
    %v565 = vmul.f32 %v562, 1.442695
    %v566 = vpow.pop %v565
    %v567 = vadd.f32 %v564, 1.0
    %v568 = vadd.f32 %v566, 1.0
    %v569 = vrcp.pop %v567
    %v570 = vmul.f32 %v567, %v569
    %v571 = vsub.f32 1.0, %v570
    %v572 = vmul.f32 %v569, %v571
    %v573 = vadd.f32 %v569, %v572
    %vm574 = vweird.f32 %v567
    %vm575 = vweird.f32 %v569
    %vm576 = vmor %vm574, %vm575
    %v577 = vsel %vm576, %v569, %v573
    %v578 = vand.u32 2147483647, %v567
    %vm579 = vcmp.eq.f32.partialorder %v578, 8.507059e+37
    %v580 = vand.u32 %v567, 2147483648
    %v581 = vor.u32 1.1754944e-38, %v580
    %v582 = vsel %vm579, %v581, %v577
    %v583 = vmul.f32 1.0, %v582
    %v584 = vrcp.pop %v568
    %v585 = vmul.f32 %v568, %v584
    %v586 = vsub.f32 1.0, %v585
    %v587 = vmul.f32 %v584, %v586
    %v588 = vadd.f32 %v584, %v587
    %vm589 = vweird.f32 %v568
    %vm590 = vweird.f32 %v584
    %vm591 = vmor %vm589, %vm590
    %v592 = vsel %vm591, %v584, %v588
    %v593 = vand.u32 2147483647, %v568
    %vm594 = vcmp.eq.f32.partialorder %v593, 8.507059e+37
    %v595 = vand.u32 %v568, 2147483648
    %v596 = vor.u32 1.1754944e-38, %v595
    %v597 = vsel %vm594, %v596, %v592
    %v598 = vmul.f32 1.0, %v597
    %v599 = vld [vmem:[%s8] sm:$0xff]
    %v600 = vld [vmem:[%s8 + $0x8] sm:$0xff]
    %vm601 = vcmp.lt.f32.partialorder %v454, 1.0
    %vm602 = vcmp.lt.f32.partialorder %v455, 1.0
    %v603 = vsel %vm601, 1, 0
    %v604 = vsel %vm602, 1, 0
    %v605 = vcvt.s32.f32 %v603
    %v606 = vcvt.s32.f32 %v604
    %v607 = vmul.f32 %v583, %v605
    %v608 = vmul.f32 %v598, %v606
    %v609 = vadd.f32 %v454, %v607
    %v610 = vadd.f32 %v455, %v608
    %vm611 = vcmp.gt.f32.partialorder %v609, 0.9
    %vm612 = vcmp.gt.f32.partialorder %v610, 0.9
    %v613 = vsel %vm611, 1, 0
    %v614 = vsel %vm612, 1, 0
    %v615 = vcvt.s32.f32 %v613
    %v616 = vcvt.s32.f32 %v614
    %v617 = vmul.f32 %v615, %v605
    %v618 = vmul.f32 %v616, %v606
    %vm619 = vcmp.le.f32.partialorder %v609, 0.9
    %vm620 = vcmp.le.f32.partialorder %v610, 0.9
    %v621 = vsel %vm619, 1, 0
    %v622 = vsel %vm620, 1, 0
    %v623 = vcvt.s32.f32 %v621
    %v624 = vcvt.s32.f32 %v622
    %v625 = vmul.f32 %v623, %v605
    %v626 = vmul.f32 %v624, %v606
    %v627 = vmul.f32 %v583, %v625
    %v628 = vmul.f32 %v598, %v626
    %v629 = vadd.f32 %v454, %v627
    %v630 = vadd.f32 %v455, %v628
    %v631 = vsub.f32 1.0, %v629
    %v632 = vsub.f32 1.0, %v630
    %v633 = vmul.f32 %v617, %v631
    %v634 = vmul.f32 %v618, %v632
    %v635 = vadd.f32 %v599, %v633
    %v636 = vadd.f32 %v600, %v634
    %637 = vst.msk [vmem:[%s8] sm:$0xff] %vm126, %v635
    %638 = vst.msk [vmem:[%s8 + $0x8] sm:$0xff] %vm126, %v636
    %v639 = vld [vmem:[%s9] sm:$0xff]
    %v640 = vld [vmem:[%s9 + $0x8] sm:$0xff]
    %v641 = vadd.f32 %v639, %v625
    %v642 = vadd.f32 %v640, %v626
    %v643 = vadd.f32 %v641, %v617
    %v644 = vadd.f32 %v642, %v618
    %645 = vst.msk [vmem:[%s9] sm:$0xff] %vm126, %v643
    %646 = vst.msk [vmem:[%s9 + $0x8] sm:$0xff] %vm126, %v644
    %v647 = vmul.f32 %v617, %v635
    %v648 = vmul.f32 %v618, %v636
    %v649 = vadd.f32 %v627, %v647
    %v650 = vadd.f32 %v628, %v648
    %v651 = vpack.c.bf16 %v529, %v528
    %v653 = vsel %vm123, %v651, 0
    %655 = vmatpush.bf16.msra.mxu0 0
    %656 = vmatpush.bf16.msra.mxu0 0
    %657 = vmatpush.bf16.msra.mxu0 0
    %658 = vmatpush.bf16.msra.mxu0 0
    %659 = vmatpush.bf16.msra.mxu0 0
    %660 = vmatpush.bf16.msra.mxu0 0
    %661 = vmatpush.bf16.msra.mxu0 %v277
    %662 = vmatpush.bf16.msra.mxu0 %v276
    %663 = vmatmul.bf16.gmra.mxu0 %v653
    %v664 = vpop.f32.mrf.mxu0
    %v665 = vadd.f32 %v266, %v664
    %v666 = vpop.f32.mrf.mxu0
    %v667 = vadd.f32 %v266, %v666
    %668 = vdwg.mxu0
    %v669 = vmul.f32 %v665, %v665
    %v670 = vmul.f32 %v667, %v667
    %v671 = vmul.f32 %v665, %v669
    %v672 = vmul.f32 %v667, %v670
    %v673 = vmul.f32 %v671, 0.044715
    %v674 = vmul.f32 %v672, 0.044715
    %v675 = vadd.f32 %v665, %v673
    %v676 = vadd.f32 %v667, %v674
    %v677 = vmul.f32 %v675, 0.7978846
    %v678 = vmul.f32 %v676, 0.7978846
    %v679 = vtanh.pop %v677
    %v680 = vtanh.pop %v678
    %v681 = vadd.f32 %v679, 1.0
    %v682 = vadd.f32 %v680, 1.0
    %v683 = vmul.f32 %v681, 0.5
    %v684 = vmul.f32 %v682, 0.5
    %v685 = vmul.f32 %v665, %v683
    %v686 = vmul.f32 %v667, %v684
    %v687 = vld [vmem:[#allocation12] sm:$0xff]
    %v688 = vld [vmem:[#allocation12 + $0x8] sm:$0xff]
    %v689 = vsub.f32 %v685, %v687
    %v690 = vsub.f32 %v686, %v688
    %692 = vset.pattern.permute.xlu0 0
    %693 = vperm.xlu0 %692, %v649
    %v694 = vpop.permute.xlu0 %693
    %697 = vset.pattern.permute.xlu0 0
    %698 = vperm.xlu0 %697, %v650
    %v699 = vpop.permute.xlu0 %698
    %v701 = vmul.f32 %v694, %v689
    %v702 = vmul.f32 %v699, %v690
    %v703 = vadd.f32 %v687, %v701
    %v704 = vadd.f32 %v688, %v702
    %705 = vst.msk [vmem:[#allocation12] sm:$0xff] %vm123, %v703
    %706 = vst.msk [vmem:[#allocation12 + $0x8] sm:$0xff] %vm123, %v704
    // Predicated region
    $region50: #{tpu_custom_call.1} parent=1 // pred_check
      _
    $region51: #{tpu_custom_call.1} parent=1 // pred_check_branch
      %708 = sbr.rel (0) target = $region53
    $region52: #{tpu_custom_call.1} parent=1 // pred_region
      %710 = vsyncadd [#allocation5], 0
      %s711 = sshll.u32 [#allocation12], 4
      %s712 = int_to_ptr.vmem [resolvable:$true] %s711
      %s713 = sshll.u32 %s7, 4
      %s714 = int_to_ptr.hbm [resolvable:$true] %s713
      %719 = dma.vmem_to_hbm [thread:$0]  %s712, 256, %s714, [#allocation5], 128, 128, 8
    $region53: #{tpu_custom_call.1} parent=1 // pred_fallthru
      _
    // Predicated region
    $region54: #{tpu_custom_call.1} parent=1 // pred_check
      _
    $region55: #{tpu_custom_call.1} parent=1 // pred_check_branch
      %721 = sbr.rel (0) target = $region57
    $region56: #{tpu_custom_call.1} parent=1 // pred_region
      _
    $region57: #{tpu_custom_call.1} parent=1 // pred_fallthru
      _
    // Predicated region
    $region58: #{tpu_custom_call.1} parent=1 // pred_check
      _
    $region59: #{tpu_custom_call.1} parent=1 // pred_check_branch
      %723 = sbr.rel (0) target = $region61
    $region60: #{tpu_custom_call.1} parent=1 // pred_region
      _
    $region61: #{tpu_custom_call.1} parent=1 // pred_fallthru
      _
    // Predicated region
    $region62: #{tpu_custom_call.1} parent=1 // pred_check
      _
    $region63: #{tpu_custom_call.1} parent=1 // pred_check_branch
      %725 = sbr.rel (0) target = $region65
    $region64: #{tpu_custom_call.1} parent=1 // pred_region
      %727 = dma.done [#allocation5], 256
    $region65: #{tpu_custom_call.1} parent=1 // pred_fallthru
      _
    // Predicated region
    $region66: #{tpu_custom_call.1} parent=1 // pred_check
      _
    $region67: #{tpu_custom_call.1} parent=1 // pred_check_branch
      %729 = sbr.rel (0) target = $region69
    $region68: #{tpu_custom_call.1} parent=1 // pred_region
      _
    $region69: #{tpu_custom_call.1} parent=1 // pred_fallthru
      _
    // Predicated region
    $region70: #{tpu_custom_call.1} parent=1 // pred_check
      _
    $region71: #{tpu_custom_call.1} parent=1 // pred_check_branch
      %731 = sbr.rel (0) target = $region73
    $region72: #{tpu_custom_call.1} parent=1 // pred_region
      _
    $region73: #{tpu_custom_call.1} parent=1 // pred_fallthru
      _
    %732 = vsyncpa [#allocation4], 1
    %733 = vsyncpa [#allocation7], 1
    %734 = vsyncpa [#allocation10], 1
    %735 = vsyncpa [#allocation5], 1

</llo_original>
